<compile_context>
chip_gen: v5e
topology: v5e:2x2
jax: 0.10.0
libtpu: 0.0.40
codegen_flags: <defaults>
</compile_context>

<pallas_src>
import jax
import jax.numpy as jnp
from jax import lax
from jax.experimental import pallas as pl
from jax.experimental.pallas import tpu as pltpu

EPS = 1e-5

_LANE = 128
_SMALL_BYTES = 16 * 1024                 # below this, XLA fusion beats a kernel launch
_TILE_BUDGET_BYTES = 8 * 1024 * 1024     # per block; ~4x with double-buffered in+out
_VMEM_LIMIT_BYTES = 40 * 1024 * 1024     # safe on v5e/v6e (128 MiB) and v7x (64 MiB)


def _sublane_multiple(dtype):
    return {4: 8, 2: 16, 1: 32}.get(jnp.dtype(dtype).itemsize, 8)


# ----------------------------- kernels ------------------------------------ #

def _batchnorm1d_kernel(x_ref, gamma_ref, beta_ref, o_ref):
    """BatchNorm1d (training-mode stats) on an (N, TC) channel-column tile.

    Per-channel reduction over axis 0 (sublane reduction); gamma/rsqrt folded
    into a (1, TC) scale/shift so the broadcast apply is x*scale + shift.
    """
    x = x_ref[...].astype(jnp.float32)                          # (N, TC)
    mean = jnp.mean(x, axis=0, keepdims=True)                   # (1, TC)
    var = jnp.mean(jnp.square(x - mean), axis=0, keepdims=True)  # biased var
    inv = lax.rsqrt(var + EPS)                                  # EUP slot (free)
    scale = gamma_ref[...] * inv                                # (1, TC)
    shift = beta_ref[...] - mean * scale                        # (1, TC)
    o_ref[...] = (x * scale + shift).astype(o_ref.dtype)        # 2 VPU ops / elem


def _layernorm_kernel(x_ref, gamma_ref, beta_ref, o_ref):
    """LayerNorm over the last dim of a (TN, C) row tile (lane reduction)."""
    x = x_ref[...].astype(jnp.float32)                          # (TN, C)
    mean = jnp.mean(x, axis=-1, keepdims=True)                  # (TN, 1)
    centered = x - mean
    var = jnp.mean(centered * centered, axis=-1, keepdims=True)
    inv = lax.rsqrt(var + EPS)                                  # EUP slot (free)
    o_ref[...] = (centered * inv * gamma_ref[...] + beta_ref[...]).astype(o_ref.dtype)


# ------------------------- plain-JAX fallback ------------------------------ #

def _normalize_ref(x, gamma2, beta2, norm):
    """Reference / fallback path (gamma2, beta2 are (1, C) float32)."""
    xf = x.astype(jnp.float32)
    axis = 0 if norm == "batch" else -1
    mean = jnp.mean(xf, axis=axis, keepdims=True)
    var = jnp.mean(jnp.square(xf - mean), axis=axis, keepdims=True)
    y = (xf - mean) * lax.rsqrt(var + EPS) * gamma2 + beta2
    return y.astype(x.dtype)


# ----------------------------- wrapper ------------------------------------- #

def normalize(x, gamma, beta, norm="batch"):
    """Pallas-backed Normalize.forward.

    x:     (N, C) float array
    gamma: (C,)   affine scale  (BatchNorm1d.weight / LayerNorm.weight)
    beta:  (C,)   affine shift  (BatchNorm1d.bias   / LayerNorm.bias)
    """
    if norm == "none" or gamma is None:
        return x  # identity branch of the module; no kernel needed

    assert x.ndim == 2, "Normalize expects (N, C) input"
    N, C = x.shape
    itemsize = x.dtype.itemsize
    gamma2 = gamma.reshape(1, C).astype(jnp.float32)
    beta2 = beta.reshape(1, C).astype(jnp.float32)

    # Tiny inputs: kernel launch + DMA setup is pure overhead -> plain jnp.
    if N * C * itemsize < _SMALL_BYTES:
        return _normalize_ref(x, gamma2, beta2, norm)

    max_tile_elems = _TILE_BUDGET_BYTES // itemsize

    if norm == "batch":
        # Tile the channel axis: each (N, TC) column block has independent
        # batch statistics, so this is a single pass with no accumulator.
        if N * C * itemsize <= _TILE_BUDGET_BYTES:
            tc = C                                   # single block (exempt from 128 rule)
        else:
            tc = (max_tile_elems // N) // _LANE * _LANE  # lane-dense tile width
            if tc < _LANE:
                # TODO(synk): two-pass sum/sumsq (Welford/shifted) BatchNorm for N
                # too large for a single (N, TC) column tile; fall back to jnp.
                return _normalize_ref(x, gamma2, beta2, norm)
            tc = min(tc, C)
        kernel = _batchnorm1d_kernel
        grid = (pl.cdiv(C, tc),)
        in_specs = [
            pl.BlockSpec((N, tc), lambda j: (0, j)),
            pl.BlockSpec((1, tc), lambda j: (0, j)),
            pl.BlockSpec((1, tc), lambda j: (0, j)),
        ]
        out_spec = pl.BlockSpec((N, tc), lambda j: (0, j))
    else:  # 'layer'
        # Tile the row axis: per-row stats reduce over the full (lane) C axis.
        sub = _sublane_multiple(x.dtype)
        if sub * C * itemsize > _TILE_BUDGET_BYTES:
            # TODO(synk): feature-axis tiling with a two-pass reduction for very wide C.
            return _normalize_ref(x, gamma2, beta2, norm)
        tn = max(sub, (max_tile_elems // C) // sub * sub)
        if tn >= N:
            tn = N                                   # single block (exempt from sublane rule)
        kernel = _layernorm_kernel
        grid = (pl.cdiv(N, tn),)
        in_specs = [
            pl.BlockSpec((tn, C), lambda i: (i, 0)),
            pl.BlockSpec((1, C), lambda i: (0, 0)),
            pl.BlockSpec((1, C), lambda i: (0, 0)),
        ]
        out_spec = pl.BlockSpec((tn, C), lambda i: (i, 0))

    return pl.pallas_call(
        kernel,
        out_shape=jax.ShapeDtypeStruct((N, C), x.dtype),
        grid=grid,
        in_specs=in_specs,
        out_specs=out_spec,
        compiler_params=pltpu.CompilerParams(
            dimension_semantics=("parallel",),       # independent blocks; v7x megacore
            vmem_limit_bytes=_VMEM_LIMIT_BYTES,
        ),
    )(x, gamma2, beta2)


# ------------------------------- demo -------------------------------------- #

if __name__ == "__main__":
    key = jax.random.PRNGKey(0)
    kx, kg, kb = jax.random.split(key, 3)

    # Small but large enough to take the Pallas path (64*256*4 B = 64 KiB).
    N, C = 64, 256
    x = jax.random.normal(kx, (N, C), dtype=jnp.float32)

    # PyTorch default init is weight=1, bias=0; perturb deterministically so
    # the affine path is actually exercised.
    gamma = 1.0 + 0.1 * jax.random.normal(kg, (C,), dtype=jnp.float32)
    beta = 0.1 * jax.random.normal(kb, (C,), dtype=jnp.float32)

    g2 = gamma.reshape(1, C)
    b2 = beta.reshape(1, C)

    # Default module path: norm='batch' -> BatchNorm1d(dim), training-mode stats.
    y_bn = normalize(x, gamma, beta, norm="batch")
    jax.block_until_ready(y_bn)
    y_bn_ref = _normalize_ref(x, g2, b2, "batch")
    assert jnp.allclose(y_bn, y_bn_ref, atol=1e-4, rtol=1e-4)

    # 'layer' branch -> LayerNorm(dim).
    y_ln = normalize(x, gamma, beta, norm="layer")
    jax.block_until_ready(y_ln)
    y_ln_ref = _normalize_ref(x, g2, b2, "layer")
    assert jnp.allclose(y_ln, y_ln_ref, atol=1e-4, rtol=1e-4)

    # Tiny-input fast path (plain jnp) still matches the reference.
    xs = jax.random.normal(kx, (8, 32), dtype=jnp.float32)
    gs = jnp.ones((32,), jnp.float32)
    bs = jnp.zeros((32,), jnp.float32)
    y_small = normalize(xs, gs, bs, norm="batch")
    assert jnp.allclose(
        y_small, _normalize_ref(xs, gs.reshape(1, -1), bs.reshape(1, -1), "batch"),
        atol=1e-4, rtol=1e-4)

    # 'none' / dim=None branch: identity.
    y_id = normalize(x, None, None, norm="none")
    assert jnp.array_equal(y_id, x)

    print("KERNEL_OK")
</pallas_src>

<mosaic_0001>
module attributes {stable_mosaic.version = 11 : i64} {
  func.func @_batchnorm1d_kernel(%arg0: i32, %arg1: memref<64x256xf32, #tpu.memory_space<vmem>>, %arg2: memref<1x256xf32, #tpu.memory_space<vmem>>, %arg3: memref<1x256xf32, #tpu.memory_space<vmem>>, %arg4: memref<64x256xf32, #tpu.memory_space<vmem>>) attributes {dimension_semantics = [#tpu.dimension_semantics<parallel>], iteration_bounds = array<i64: 1>, scalar_prefetch = 0 : i64, scratch_operands = 0 : i64, tpu.core_type = #tpu.core_type<tc>, window_params = [{transform_indices = @transform_0, window_bounds = array<i64: 64, 256>}, {transform_indices = @transform_1, window_bounds = array<i64: 1, 256>}, {transform_indices = @transform_2, window_bounds = array<i64: 1, 256>}, {transform_indices = @transform_3, window_bounds = array<i64: 64, 256>}]} {
    %c0 = arith.constant 0 : index
    %c0_0 = arith.constant 0 : index
    %0 = vector.load %arg1[%c0, %c0_0] : memref<64x256xf32, #tpu.memory_space<vmem>>, vector<64x256xf32>
    %cst = arith.constant dense<0.000000e+00> : vector<256xf32>
    %1 = vector.multi_reduction <add>, %0, %cst [0] : vector<64x256xf32> to vector<256xf32>
    %2 = vector.shape_cast %1 : vector<256xf32> to vector<1x256xf32>
    %cst_1 = arith.constant 6.400000e+01 : f32
    %3 = vector.broadcast %cst_1 : f32 to vector<1x256xf32>
    %4 = arith.divf %2, %3 : vector<1x256xf32>
    %5 = vector.broadcast %4 : vector<1x256xf32> to vector<64x256xf32>
    %6 = arith.subf %0, %5 : vector<64x256xf32>
    %7 = arith.mulf %6, %6 : vector<64x256xf32>
    %cst_2 = arith.constant dense<0.000000e+00> : vector<256xf32>
    %8 = vector.multi_reduction <add>, %7, %cst_2 [0] : vector<64x256xf32> to vector<256xf32>
    %9 = vector.shape_cast %8 : vector<256xf32> to vector<1x256xf32>
    %cst_3 = arith.constant 6.400000e+01 : f32
    %10 = vector.broadcast %cst_3 : f32 to vector<1x256xf32>
    %11 = arith.divf %9, %10 : vector<1x256xf32>
    %cst_4 = arith.constant 9.99999974E-6 : f32
    %12 = vector.broadcast %cst_4 : f32 to vector<1x256xf32>
    %13 = arith.addf %11, %12 : vector<1x256xf32>
    %14 = math.rsqrt %13 : vector<1x256xf32>
    %c0_5 = arith.constant 0 : index
    %c0_6 = arith.constant 0 : index
    %15 = vector.load %arg2[%c0_5, %c0_6] : memref<1x256xf32, #tpu.memory_space<vmem>>, vector<1x256xf32>
    %16 = arith.mulf %15, %14 : vector<1x256xf32>
    %c0_7 = arith.constant 0 : index
    %c0_8 = arith.constant 0 : index
    %17 = vector.load %arg3[%c0_7, %c0_8] : memref<1x256xf32, #tpu.memory_space<vmem>>, vector<1x256xf32>
    %18 = arith.mulf %4, %16 : vector<1x256xf32>
    %19 = arith.subf %17, %18 : vector<1x256xf32>
    %20 = vector.broadcast %16 : vector<1x256xf32> to vector<64x256xf32>
    %21 = arith.mulf %0, %20 : vector<64x256xf32>
    %22 = vector.broadcast %19 : vector<1x256xf32> to vector<64x256xf32>
    %23 = arith.addf %21, %22 : vector<64x256xf32>
    %c0_9 = arith.constant 0 : index
    %c0_10 = arith.constant 0 : index
    %24 = vector.load %arg4[%c0_9, %c0_10] : memref<64x256xf32, #tpu.memory_space<vmem>>, vector<64x256xf32>
    tpu.vector_store %arg4[%c0_9, %c0_10], %23 {strides = array<i32>} : memref<64x256xf32, #tpu.memory_space<vmem>>, vector<64x256xf32>,
    return
  }
  func.func @transform_0(%arg0: i32) -> (i32, i32) {
    %c0_i32 = arith.constant 0 : i32
    %c0_i32_0 = arith.constant 0 : i32
    return %c0_i32, %arg0 : i32, i32
  }
  func.func @transform_1(%arg0: i32) -> (i32, i32) {
    %c0_i32 = arith.constant 0 : i32
    %c0_i32_0 = arith.constant 0 : i32
    return %c0_i32, %arg0 : i32, i32
  }
  func.func @transform_2(%arg0: i32) -> (i32, i32) {
    %c0_i32 = arith.constant 0 : i32
    %c0_i32_0 = arith.constant 0 : i32
    return %c0_i32, %arg0 : i32, i32
  }
  func.func @transform_3(%arg0: i32) -> (i32, i32) {
    %c0_i32 = arith.constant 0 : i32
    %c0_i32_0 = arith.constant 0 : i32
    return %c0_i32, %arg0 : i32, i32
  }
}

</mosaic_0001>

<llo_original>
// kernel: tpu_custom_call.1
$region0: #{tpu_custom_call.1}
  #allocation0 [shape = 'u32[]', space=smem, size = 0x4, offset = 0x4, fixed_abs, tag = 'smem constant byte address 0x4 - core index']
  #allocation1 [shape = 'u32[72,128]{1,0:T(1,128)}', space=vmem, size = 0x9000, scoped, tag = 'internal scratch']
  %s0 = inlined_call_operand.hbm [shape: f32[64,256], index: 0, kind: input, shape index: {}]
  %s1 = inlined_call_operand.hbm [shape: f32[1,256], index: 1, kind: input, shape index: {}]
  %s2 = inlined_call_operand.hbm [shape: f32[1,256], index: 2, kind: input, shape index: {}]
  %s3 = inlined_call_operand.hbm [shape: f32[64,256], index: 3, kind: output, shape index: {}]
  %s4 = sld [smem:[#allocation0]]
  $region34: #{tpu_custom_call.1} parent=0
    _
  %s6 = ssub.s32 1, %s4
  %s7 = scalar_select 0, %s6, %s4
  $region1: #{tpu_custom_call.1} parent=0
    #allocation2 [shape = 'u8[65536]{0}', space=vmem, size = 0x10000, scoped, tag = 'input window, operand 0, single buffered']
    #allocation3 [shape = 's32[1]{0}', space=sflag, size = 0x4, scoped, tag = 'scoped memory for tpu_custom_call.1']
    #allocation4 [shape = 's32[1]{0}', space=sflag, size = 0x4, scoped, tag = 'scoped memory for tpu_custom_call.1']
    #allocation5 [shape = 'u8[1024]{0}', space=vmem, size = 0x400, scoped, tag = 'input window, operand 1, single buffered']
    #allocation6 [shape = 's32[1]{0}', space=sflag, size = 0x4, scoped, tag = 'scoped memory for tpu_custom_call.1']
    #allocation7 [shape = 'u8[1024]{0}', space=vmem, size = 0x400, scoped, tag = 'input window, operand 2, single buffered']
    #allocation8 [shape = 'u8[65536]{0}', space=vmem, size = 0x10000, scoped, tag = 'output window, operand 0, single buffered']
    %8 = vsyncpa [#allocation3], 0
    %9 = vsyncpa [#allocation6], 0
    %10 = vsyncpa [#allocation4], 0
    // Predicated region
    $region2: #{tpu_custom_call.1} parent=1 // pred_check
      _
    $region3: #{tpu_custom_call.1} parent=1 // pred_check_branch
      %12 = sbr.rel (0) target = $region5
    $region4: #{tpu_custom_call.1} parent=1 // pred_region
      %14 = vsyncadd [#allocation3], 0
      %s15 = sshll.u32 %s0, 4
      %s16 = int_to_ptr.hbm [resolvable:$true] %s15
      %s17 = sshll.u32 [#allocation2], 4
      %s18 = int_to_ptr.vmem [resolvable:$true] %s17
      %23 = dma.hbm_to_vmem [thread:$0]  %s16, 2048, %s18, [#allocation3], 256, 256, 16
    $region5: #{tpu_custom_call.1} parent=1 // pred_fallthru
      _
    // Predicated region
    $region6: #{tpu_custom_call.1} parent=1 // pred_check
      _
    $region7: #{tpu_custom_call.1} parent=1 // pred_check_branch
      %25 = sbr.rel (0) target = $region9
    $region8: #{tpu_custom_call.1} parent=1 // pred_region
      %27 = vsyncadd [#allocation6], 0
      %s29 = sshll.u32 %s1, 4
      %s30 = int_to_ptr.hbm [resolvable:$true] %s29
      %s31 = sshll.u32 [#allocation5], 4
      %s32 = int_to_ptr.vmem [resolvable:$true] %s31
      %34 = dma.hbm_to_vmem [thread:$0]  %s30, 32, %s32, [#allocation6]
    $region9: #{tpu_custom_call.1} parent=1 // pred_fallthru
      _
    // Predicated region
    $region10: #{tpu_custom_call.1} parent=1 // pred_check
      _
    $region11: #{tpu_custom_call.1} parent=1 // pred_check_branch
      %36 = sbr.rel (0) target = $region13
    $region12: #{tpu_custom_call.1} parent=1 // pred_region
      %38 = vsyncadd [#allocation6], 0
      %s40 = sshll.u32 %s2, 4
      %s41 = int_to_ptr.hbm [resolvable:$true] %s40
      %s42 = sshll.u32 [#allocation7], 4
      %s43 = int_to_ptr.vmem [resolvable:$true] %s42
      %45 = dma.hbm_to_vmem [thread:$0]  %s41, 32, %s43, [#allocation6]
    $region13: #{tpu_custom_call.1} parent=1 // pred_fallthru
      _
    // Predicated region
    $region14: #{tpu_custom_call.1} parent=1 // pred_check
      _
    $region15: #{tpu_custom_call.1} parent=1 // pred_check_branch
      %47 = sbr.rel (0) target = $region17
    $region16: #{tpu_custom_call.1} parent=1 // pred_region
      %49 = dma.done [#allocation3], 2048
    $region17: #{tpu_custom_call.1} parent=1 // pred_fallthru
      _
    // Predicated region
    $region18: #{tpu_custom_call.1} parent=1 // pred_check
      _
    $region19: #{tpu_custom_call.1} parent=1 // pred_check_branch
      %51 = sbr.rel (0) target = $region21
    $region20: #{tpu_custom_call.1} parent=1 // pred_region
      %53 = dma.done [#allocation6], 32
    $region21: #{tpu_custom_call.1} parent=1 // pred_fallthru
      _
    // Predicated region
    $region22: #{tpu_custom_call.1} parent=1 // pred_check
      _
    $region23: #{tpu_custom_call.1} parent=1 // pred_check_branch
      %55 = sbr.rel (0) target = $region25
    $region24: #{tpu_custom_call.1} parent=1 // pred_region
      %57 = dma.done [#allocation6], 32
    $region25: #{tpu_custom_call.1} parent=1 // pred_fallthru
      _
    %v58 = vld [vmem:[#allocation2] sm:$0xff]
    %v59 = vld [vmem:[#allocation2 + $0x8] sm:$0xff]
    %v60 = vld [vmem:[#allocation2 + $0x10] sm:$0xff]
    %v61 = vld [vmem:[#allocation2 + $0x18] sm:$0xff]
    %v62 = vld [vmem:[#allocation2 + $0x20] sm:$0xff]
    %v63 = vld [vmem:[#allocation2 + $0x28] sm:$0xff]
    %v64 = vld [vmem:[#allocation2 + $0x30] sm:$0xff]
    %v65 = vld [vmem:[#allocation2 + $0x38] sm:$0xff]
    %v66 = vld [vmem:[#allocation2 + $0x40] sm:$0xff]
    %v67 = vld [vmem:[#allocation2 + $0x48] sm:$0xff]
    %v68 = vld [vmem:[#allocation2 + $0x50] sm:$0xff]
    %v69 = vld [vmem:[#allocation2 + $0x58] sm:$0xff]
    %v70 = vld [vmem:[#allocation2 + $0x60] sm:$0xff]
    %v71 = vld [vmem:[#allocation2 + $0x68] sm:$0xff]
    %v72 = vld [vmem:[#allocation2 + $0x70] sm:$0xff]
    %v73 = vld [vmem:[#allocation2 + $0x78] sm:$0xff]
    %v74 = vadd.f32 %v58, %v60
    %v75 = vadd.f32 %v74, %v62
    %v76 = vadd.f32 %v75, %v64
    %v77 = vadd.f32 %v76, %v66
    %v78 = vadd.f32 %v77, %v68
    %v79 = vadd.f32 %v78, %v70
    %v80 = vadd.f32 %v79, %v72
    %v81 = vrot.slane %v80, 4
    %v82 = vadd.f32 %v80, %v81
    %v83 = vrot.slane %v82, 2
    %v84 = vadd.f32 %v82, %v83
    %v85 = vrot.slane %v84, 1
    %v86 = vadd.f32 %v84, %v85
    %v87 = vadd.f32 %v59, %v61
    %v88 = vadd.f32 %v87, %v63
    %v89 = vadd.f32 %v88, %v65
    %v90 = vadd.f32 %v89, %v67
    %v91 = vadd.f32 %v90, %v69
    %v92 = vadd.f32 %v91, %v71
    %v93 = vadd.f32 %v92, %v73
    %v94 = vrot.slane %v93, 4
    %v95 = vadd.f32 %v93, %v94
    %v96 = vrot.slane %v95, 2
    %v97 = vadd.f32 %v95, %v96
    %v98 = vrot.slane %v97, 1
    %v99 = vadd.f32 %v97, %v98
    %v100 = vrcp.pop 64.0
    %v101 = vmul.f32 64.0, %v100
    %v102 = vsub.f32 1.0, %v101
    %v103 = vmul.f32 %v100, %v102
    %v104 = vadd.f32 %v100, %v103
    %vm105 = vweird.f32 %v100
    %v106 = vsel %vm105, %v100, %v104
    %v107 = vmul.f32 %v86, %v106
    %v108 = vmul.f32 %v99, %v106
    %v109 = vsub.f32 %v58, %v107
    %v110 = vsub.f32 %v59, %v108
    %v111 = vsub.f32 %v60, %v107
    %v112 = vsub.f32 %v61, %v108
    %v113 = vsub.f32 %v62, %v107
    %v114 = vsub.f32 %v63, %v108
    %v115 = vsub.f32 %v64, %v107
    %v116 = vsub.f32 %v65, %v108
    %v117 = vsub.f32 %v66, %v107
    %v118 = vsub.f32 %v67, %v108
    %v119 = vsub.f32 %v68, %v107
    %v120 = vsub.f32 %v69, %v108
    %v121 = vsub.f32 %v70, %v107
    %v122 = vsub.f32 %v71, %v108
    %v123 = vsub.f32 %v72, %v107
    %v124 = vsub.f32 %v73, %v108
    %v125 = vmul.f32 %v109, %v109
    %v126 = vmul.f32 %v110, %v110
    %v127 = vmul.f32 %v111, %v111
    %v128 = vmul.f32 %v112, %v112
    %v129 = vmul.f32 %v113, %v113
    %v130 = vmul.f32 %v114, %v114
    %v131 = vmul.f32 %v115, %v115
    %v132 = vmul.f32 %v116, %v116
    %v133 = vmul.f32 %v117, %v117
    %v134 = vmul.f32 %v118, %v118
    %v135 = vmul.f32 %v119, %v119
    %v136 = vmul.f32 %v120, %v120
    %v137 = vmul.f32 %v121, %v121
    %v138 = vmul.f32 %v122, %v122
    %v139 = vmul.f32 %v123, %v123
    %v140 = vmul.f32 %v124, %v124
    %v141 = vadd.f32 %v125, %v127
    %v142 = vadd.f32 %v141, %v129
    %v143 = vadd.f32 %v142, %v131
    %v144 = vadd.f32 %v143, %v133
    %v145 = vadd.f32 %v144, %v135
    %v146 = vadd.f32 %v145, %v137
    %v147 = vadd.f32 %v146, %v139
    %v148 = vrot.slane %v147, 4
    %v149 = vadd.f32 %v147, %v148
    %v150 = vrot.slane %v149, 2
    %v151 = vadd.f32 %v149, %v150
    %v152 = vrot.slane %v151, 1
    %v153 = vadd.f32 %v151, %v152
    %v154 = vadd.f32 %v126, %v128
    %v155 = vadd.f32 %v154, %v130
    %v156 = vadd.f32 %v155, %v132
    %v157 = vadd.f32 %v156, %v134
    %v158 = vadd.f32 %v157, %v136
    %v159 = vadd.f32 %v158, %v138
    %v160 = vadd.f32 %v159, %v140
    %v161 = vrot.slane %v160, 4
    %v162 = vadd.f32 %v160, %v161
    %v163 = vrot.slane %v162, 2
    %v164 = vadd.f32 %v162, %v163
    %v165 = vrot.slane %v164, 1
    %v166 = vadd.f32 %v164, %v165
    %v167 = vmul.f32 %v153, %v106
    %v168 = vmul.f32 %v166, %v106
    %v169 = vadd.f32 %v167, 1e-05
    %v170 = vadd.f32 %v168, 1e-05
    %v171 = vrsqrt.pop %v169
    %v172 = vmul.f32 %v171, %v169
    %v173 = vmul.f32 %v172, %v171
    %v174 = vmul.f32 0.5, %v173
    %v175 = vsub.f32 1.5, %v174
    %v176 = vmul.f32 %v171, %v175
    %vm177 = vweird.f32 %v169
    %vm178 = vweird.f32 %v171
    %vm179 = vmor %vm177, %vm178
    %v180 = vsel %vm179, %v171, %v176
    %v181 = vrsqrt.pop %v170
    %v182 = vmul.f32 %v181, %v170
    %v183 = vmul.f32 %v182, %v181
    %v184 = vmul.f32 0.5, %v183
    %v185 = vsub.f32 1.5, %v184
    %v186 = vmul.f32 %v181, %v185
    %vm187 = vweird.f32 %v170
    %vm188 = vweird.f32 %v181
    %vm189 = vmor %vm187, %vm188
    %v190 = vsel %vm189, %v181, %v186
    %v191 = vld [vmem:[#allocation5] sm:$0x3]
    %v194 = vrot.slane %v190, 7
    %vm195 = vcmask 1040384
    %v196 = vsel %vm195, %v180, %v194
    %v198 = vmul.f32 %v191, %v196
    %v199 = vld [vmem:[#allocation7] sm:$0x3]
    %v201 = vperm.slane %v198, 0
    %v202 = vperm.slane %v198, 1
    %v205 = vmul.f32 %v107, %v201
    %v206 = vmul.f32 %v108, %v202
    %v209 = vrot.slane %v206, 7
    %v210 = vsel %vm195, %v205, %v209
    %v212 = vsub.f32 %v199, %v210
    %v213 = vmul.f32 %v58, %v201
    %v214 = vmul.f32 %v59, %v202
    %v215 = vmul.f32 %v60, %v201
    %v216 = vmul.f32 %v61, %v202
    %v217 = vmul.f32 %v62, %v201
    %v218 = vmul.f32 %v63, %v202
    %v219 = vmul.f32 %v64, %v201
    %v220 = vmul.f32 %v65, %v202
    %v221 = vmul.f32 %v66, %v201
    %v222 = vmul.f32 %v67, %v202
    %v223 = vmul.f32 %v68, %v201
    %v224 = vmul.f32 %v69, %v202
    %v225 = vmul.f32 %v70, %v201
    %v226 = vmul.f32 %v71, %v202
    %v227 = vmul.f32 %v72, %v201
    %v228 = vmul.f32 %v73, %v202
    %v230 = vperm.slane %v212, 0
    %v231 = vperm.slane %v212, 1
    %v234 = vadd.f32 %v213, %v230
    %v235 = vadd.f32 %v214, %v231
    %v236 = vadd.f32 %v215, %v230
    %v237 = vadd.f32 %v216, %v231
    %v238 = vadd.f32 %v217, %v230
    %v239 = vadd.f32 %v218, %v231
    %v240 = vadd.f32 %v219, %v230
    %v241 = vadd.f32 %v220, %v231
    %v242 = vadd.f32 %v221, %v230
    %v243 = vadd.f32 %v222, %v231
    %v244 = vadd.f32 %v223, %v230
    %v245 = vadd.f32 %v224, %v231
    %v246 = vadd.f32 %v225, %v230
    %v247 = vadd.f32 %v226, %v231
    %v248 = vadd.f32 %v227, %v230
    %v249 = vadd.f32 %v228, %v231
    %250 = vst [vmem:[#allocation8] sm:$0xff] %v234
    %251 = vst [vmem:[#allocation8 + $0x8] sm:$0xff] %v235
    %252 = vst [vmem:[#allocation8 + $0x10] sm:$0xff] %v236
    %253 = vst [vmem:[#allocation8 + $0x18] sm:$0xff] %v237
    %254 = vst [vmem:[#allocation8 + $0x20] sm:$0xff] %v238
    %255 = vst [vmem:[#allocation8 + $0x28] sm:$0xff] %v239
    %256 = vst [vmem:[#allocation8 + $0x30] sm:$0xff] %v240
    %257 = vst [vmem:[#allocation8 + $0x38] sm:$0xff] %v241
    %258 = vst [vmem:[#allocation8 + $0x40] sm:$0xff] %v242
    %259 = vst [vmem:[#allocation8 + $0x48] sm:$0xff] %v243
    %260 = vst [vmem:[#allocation8 + $0x50] sm:$0xff] %v244
    %261 = vst [vmem:[#allocation8 + $0x58] sm:$0xff] %v245
    %262 = vst [vmem:[#allocation8 + $0x60] sm:$0xff] %v246
    %263 = vst [vmem:[#allocation8 + $0x68] sm:$0xff] %v247
    %264 = vst [vmem:[#allocation8 + $0x70] sm:$0xff] %v248
    %265 = vst [vmem:[#allocation8 + $0x78] sm:$0xff] %v249
    // Predicated region
    $region26: #{tpu_custom_call.1} parent=1 // pred_check
      _
    $region27: #{tpu_custom_call.1} parent=1 // pred_check_branch
      %267 = sbr.rel (0) target = $region29
    $region28: #{tpu_custom_call.1} parent=1 // pred_region
      %269 = vsyncadd [#allocation4], 0
      %s270 = sshll.u32 [#allocation8], 4
      %s271 = int_to_ptr.vmem [resolvable:$true] %s270
      %s272 = sshll.u32 %s3, 4
      %s273 = int_to_ptr.hbm [resolvable:$true] %s272
      %278 = dma.vmem_to_hbm [thread:$0]  %s271, 2048, %s273, [#allocation4], 256, 256, 16
    $region29: #{tpu_custom_call.1} parent=1 // pred_fallthru
      _
    // Predicated region
    $region30: #{tpu_custom_call.1} parent=1 // pred_check
      _
    $region31: #{tpu_custom_call.1} parent=1 // pred_check_branch
      %280 = sbr.rel (0) target = $region33
    $region32: #{tpu_custom_call.1} parent=1 // pred_region
      %282 = dma.done [#allocation4], 2048
    $region33: #{tpu_custom_call.1} parent=1 // pred_fallthru
      _
    %283 = vsyncpa [#allocation3], 1
    %284 = vsyncpa [#allocation6], 1
    %285 = vsyncpa [#allocation4], 1

</llo_original>
